<compile_context>
chip_gen: v5e
topology: v5e:2x2
jax: 0.10.0
libtpu: 0.0.40
codegen_flags: <defaults>
</compile_context>

<pallas_src>
import functools

import jax
import jax.numpy as jnp
from jax.experimental import pallas as pl
from jax.experimental.pallas import tpu as pltpu

MARGIN = 0.2
_LANE = 128
_SUBLANE = 8


def _round_up(x, m):
    return ((x + m - 1) // m) * m


def _input_vmem_budget():
    """VMEM budget (bytes) for the input streams + in-kernel f32 temporaries."""
    try:
        cap = int(pltpu.get_tpu_info().vmem_capacity_bytes)
    except Exception:
        cap = 64 * 1024 * 1024  # conservative fallback: v7x physical VMEM
    # ~1/3 of physical VMEM: ~42 MiB on v5e/v6e (128 MiB), ~21 MiB on v7x (64 MiB)
    return max(8 * 1024 * 1024, min(cap // 3, 48 * 1024 * 1024))


def _triplet_single_kernel(a_ref, p_ref, n_ref, out_ref, *, margin):
    # Whole embedding dim in one block: no scratch, no init/finalize phases.
    a = a_ref[...]
    dp = (a - p_ref[...]).astype(jnp.float32)   # diff in input dtype, widen once
    dn = (a - n_ref[...]).astype(jnp.float32)
    d_pos = jnp.sum(dp * dp, axis=1, keepdims=True)
    d_neg = jnp.sum(dn * dn, axis=1, keepdims=True)
    losses = jnp.maximum(d_pos - d_neg + margin, 0.0)          # (tb, 1)
    out_ref[...] = jnp.broadcast_to(losses, out_ref.shape)     # lane-dense store


def _triplet_tiled_kernel(a_ref, p_ref, n_ref, out_ref, dp_acc, dn_acc, *,
                          margin, d_total, tk):
    k = pl.program_id(1)
    last = pl.num_programs(1) - 1

    @pl.when(k == 0)
    def _():
        dp_acc[...] = jnp.zeros_like(dp_acc)
        dn_acc[...] = jnp.zeros_like(dn_acc)

    def _accumulate(mask_tail):
        a = a_ref[...]
        dp = (a - p_ref[...]).astype(jnp.float32)
        dn = (a - n_ref[...]).astype(jnp.float32)
        if mask_tail:
            # ragged last D-tile: zero the out-of-range lanes BEFORE squaring
            lane = jax.lax.broadcasted_iota(jnp.int32, dp.shape, 1)
            valid = (k * tk + lane) < d_total
            dp = jnp.where(valid, dp, 0.0)
            dn = jnp.where(valid, dn, 0.0)
        dpsq = dp * dp
        dnsq = dn * dn
        # Per-lane partial sums: lane-aligned vreg adds only (no per-step XLU).
        pp = dpsq[:, 0:_LANE]
        pn = dnsq[:, 0:_LANE]
        for c in range(1, tk // _LANE):
            pp = pp + dpsq[:, c * _LANE:(c + 1) * _LANE]
            pn = pn + dnsq[:, c * _LANE:(c + 1) * _LANE]
        dp_acc[...] += pp
        dn_acc[...] += pn

    if d_total % tk == 0:
        _accumulate(False)
    else:
        @pl.when(k < last)
        def _():
            _accumulate(False)

        @pl.when(k == last)
        def _():
            _accumulate(True)

    @pl.when(k == last)
    def _():
        d_pos = jnp.sum(dp_acc[...], axis=1, keepdims=True)    # one XLU reduce
        d_neg = jnp.sum(dn_acc[...], axis=1, keepdims=True)
        losses = jnp.maximum(d_pos - d_neg + margin, 0.0)      # (tb, 1)
        out_ref[...] = jnp.broadcast_to(losses, out_ref.shape)


def triplet_loss(anchor, positive, negative, size_average=True, *,
                 margin=MARGIN, tk=None):
    """Pallas TripletLoss forward. `tk` optionally forces the D-tile size."""
    B, D = anchor.shape
    itemsize = jnp.dtype(anchor.dtype).itemsize

    budget = _input_vmem_budget()
    # VMEM bytes per (row x embedding element): 3 double-buffered input streams
    # plus an allowance for the f32 diff/square temporaries.
    per_elem = 3 * 2 * itemsize + 16

    b8 = _round_up(B, _SUBLANE)
    d128 = _round_up(D, _LANE)

    def _pick_tb(tb_cap):
        tb_ = min(b8, tb_cap)
        # give the "parallel" B axis >= 2 steps when B allows (v7x megacore)
        if b8 >= 2 * _SUBLANE and pl.cdiv(b8, tb_) < 2:
            tb_ = _round_up(pl.cdiv(b8, 2), _SUBLANE)
        return tb_

    if tk is None:
        tb_full_d = (budget // (per_elem * d128)) // _SUBLANE * _SUBLANE
        if tb_full_d >= _SUBLANE:
            tb = _pick_tb(tb_full_d)         # single-shot: whole D in one block
            block_d, nk = D, 1
        else:
            tb = _pick_tb(128)               # 128 is a cap only on the large-D path
            tk_cap = (budget // (per_elem * tb)) // _LANE * _LANE
            block_d = max(_LANE, min(d128, tk_cap))
            nk = pl.cdiv(D, block_d)
    else:
        tk_eff = _round_up(tk, _LANE)
        nk = pl.cdiv(D, tk_eff)
        tb = _pick_tb(128)
        block_d = D if nk == 1 else tk_eff

    nb = pl.cdiv(b8, tb)                     # == cdiv(B, tb) since tb % 8 == 0
    rows = nb * tb
    out_shape = jax.ShapeDtypeStruct((rows, _LANE), jnp.float32)

    # Scoped-VMEM request: inputs (x2 buffers) + f32 temporaries + output + accs.
    d_aligned = _round_up(block_d, _LANE)
    need = per_elem * tb * d_aligned + 4 * tb * _LANE * 4
    vmem_limit = int(min(100 * 1024 * 1024,
                         max(32 * 1024 * 1024, need * 5 // 4 + (2 << 20))))

    cost = pl.CostEstimate(
        flops=6 * B * D,
        transcendentals=0,
        bytes_accessed=3 * B * D * itemsize + rows * _LANE * 4,
    )

    if nk == 1:
        grid_spec = pltpu.PrefetchScalarGridSpec(
            num_scalar_prefetch=0,
            grid=(nb,),
            in_specs=[pl.BlockSpec((tb, block_d), lambda i: (i, 0))] * 3,
            out_specs=pl.BlockSpec((tb, _LANE), lambda i: (i, 0)),
        )
        kernel = functools.partial(_triplet_single_kernel, margin=margin)
        dim_sem = ("parallel",)
    else:
        grid_spec = pltpu.PrefetchScalarGridSpec(
            num_scalar_prefetch=0,
            grid=(nb, nk),                   # B parallel, D reduction last
            in_specs=[pl.BlockSpec((tb, block_d), lambda i, k: (i, k))] * 3,
            out_specs=pl.BlockSpec((tb, _LANE), lambda i, k: (i, 0)),
            scratch_shapes=[
                pltpu.VMEM((tb, _LANE), jnp.float32),  # per-lane d_pos partials
                pltpu.VMEM((tb, _LANE), jnp.float32),  # per-lane d_neg partials
            ],
        )
        kernel = functools.partial(_triplet_tiled_kernel, margin=margin,
                                   d_total=D, tk=block_d)
        dim_sem = ("parallel", "arbitrary")

    per_sample = pl.pallas_call(
        kernel,
        out_shape=out_shape,
        grid_spec=grid_spec,
        compiler_params=pltpu.CompilerParams(
            dimension_semantics=dim_sem,
            vmem_limit_bytes=vmem_limit,
        ),
        cost_estimate=cost,
    )(anchor, positive, negative)

    # Scalar reduce in plain JAX; rows past B (ragged last B-tile) are garbage
    # by construction and must be (and are) sliced off before the reduction.
    losses = per_sample[:B, 0]
    return jnp.mean(losses) if size_average else jnp.sum(losses)


def triplet_loss_ref(anchor, positive, negative, size_average=True):
    a = anchor.astype(jnp.float32)
    dp = jnp.sum((a - positive.astype(jnp.float32)) ** 2, axis=1)
    dn = jnp.sum((a - negative.astype(jnp.float32)) ** 2, axis=1)
    losses = jnp.maximum(dp - dn + MARGIN, 0.0)
    return jnp.mean(losses) if size_average else jnp.sum(losses)


if __name__ == "__main__":
    key = jax.random.PRNGKey(0)
    ka, kp, kn = jax.random.split(key, 3)

    # small shapes consistent with (anchor, positive, negative) embeddings
    B, D = 8, 256
    anchor = jax.random.normal(ka, (B, D), dtype=jnp.float32)
    positive = jax.random.normal(kp, (B, D), dtype=jnp.float32)
    negative = jax.random.normal(kn, (B, D), dtype=jnp.float32)

    # single-shot path (whole D in one block)
    out_mean = triplet_loss(anchor, positive, negative, size_average=True)
    out_sum = triplet_loss(anchor, positive, negative, size_average=False)
    jax.block_until_ready((out_mean, out_sum))
    assert jnp.allclose(out_mean, triplet_loss_ref(anchor, positive, negative, True),
                        rtol=1e-5, atol=1e-5)
    assert jnp.allclose(out_sum, triplet_loss_ref(anchor, positive, negative, False),
                        rtol=1e-5, atol=1e-5)

    # unaligned B and D, no padding copy (block last dim == full D)
    B2, D2 = 6, 300
    a2 = jax.random.normal(ka, (B2, D2), dtype=jnp.float32)
    p2 = jax.random.normal(kp, (B2, D2), dtype=jnp.float32)
    n2 = jax.random.normal(kn, (B2, D2), dtype=jnp.float32)
    out2 = triplet_loss(a2, p2, n2, size_average=True)
    jax.block_until_ready(out2)
    assert jnp.allclose(out2, triplet_loss_ref(a2, p2, n2, True), rtol=1e-5, atol=1e-5)

    # forced D-tiled path with a ragged last tile (exercises the in-kernel mask)
    out3 = triplet_loss(a2, p2, n2, size_average=True, tk=128)
    jax.block_until_ready(out3)
    assert jnp.allclose(out3, triplet_loss_ref(a2, p2, n2, True), rtol=1e-5, atol=1e-5)

    # batch large enough to split into >=2 "parallel" B tiles (v7x megacore)
    B4, D4 = 20, 384
    a4 = jax.random.normal(ka, (B4, D4), dtype=jnp.float32)
    p4 = jax.random.normal(kp, (B4, D4), dtype=jnp.float32)
    n4 = jax.random.normal(kn, (B4, D4), dtype=jnp.float32)
    out4 = triplet_loss(a4, p4, n4, size_average=False)
    jax.block_until_ready(out4)
    assert jnp.allclose(out4, triplet_loss_ref(a4, p4, n4, False), rtol=1e-5, atol=1e-5)

    # bf16 inputs: diffs stay bf16 on the VPU, accumulation in f32
    a3, p3, n3 = (x.astype(jnp.bfloat16) for x in (anchor, positive, negative))
    out5 = triplet_loss(a3, p3, n3, size_average=True)
    jax.block_until_ready(out5)
    assert jnp.allclose(out5, triplet_loss_ref(a3, p3, n3, True), rtol=5e-2, atol=5e-2)

    print("KERNEL_OK")
</pallas_src>

<mosaic_0001>
module attributes {stable_mosaic.version = 11 : i64} {
  func.func @_triplet_single_kernel(%arg0: i32, %arg1: memref<8x256xf32, #tpu.memory_space<vmem>>, %arg2: memref<8x256xf32, #tpu.memory_space<vmem>>, %arg3: memref<8x256xf32, #tpu.memory_space<vmem>>, %arg4: memref<8x128xf32, #tpu.memory_space<vmem>>) attributes {dimension_semantics = [#tpu.dimension_semantics<parallel>], iteration_bounds = array<i64: 1>, scalar_prefetch = 0 : i64, scratch_operands = 0 : i64, tpu.core_type = #tpu.core_type<tc>, window_params = [{transform_indices = @transform_0, window_bounds = array<i64: 8, 256>}, {transform_indices = @transform_1, window_bounds = array<i64: 8, 256>}, {transform_indices = @transform_2, window_bounds = array<i64: 8, 256>}, {transform_indices = @transform_3, window_bounds = array<i64: 8, 128>}]} {
    %c0 = arith.constant 0 : index
    %c0_0 = arith.constant 0 : index
    %0 = vector.load %arg1[%c0, %c0_0] : memref<8x256xf32, #tpu.memory_space<vmem>>, vector<8x256xf32>
    %c0_1 = arith.constant 0 : index
    %c0_2 = arith.constant 0 : index
    %1 = vector.load %arg2[%c0_1, %c0_2] : memref<8x256xf32, #tpu.memory_space<vmem>>, vector<8x256xf32>
    %2 = arith.subf %0, %1 : vector<8x256xf32>
    %c0_3 = arith.constant 0 : index
    %c0_4 = arith.constant 0 : index
    %3 = vector.load %arg3[%c0_3, %c0_4] : memref<8x256xf32, #tpu.memory_space<vmem>>, vector<8x256xf32>
    %4 = arith.subf %0, %3 : vector<8x256xf32>
    %5 = arith.mulf %2, %2 : vector<8x256xf32>
    %cst = arith.constant dense<0.000000e+00> : vector<8xf32>
    %6 = vector.multi_reduction <add>, %5, %cst [1] : vector<8x256xf32> to vector<8xf32>
    %7 = vector.shape_cast %6 : vector<8xf32> to vector<8x1xf32>
    %8 = arith.mulf %4, %4 : vector<8x256xf32>
    %cst_5 = arith.constant dense<0.000000e+00> : vector<8xf32>
    %9 = vector.multi_reduction <add>, %8, %cst_5 [1] : vector<8x256xf32> to vector<8xf32>
    %10 = vector.shape_cast %9 : vector<8xf32> to vector<8x1xf32>
    %11 = arith.subf %7, %10 : vector<8x1xf32>
    %cst_6 = arith.constant 2.000000e-01 : f32
    %12 = vector.broadcast %cst_6 : f32 to vector<8x1xf32>
    %13 = arith.addf %11, %12 : vector<8x1xf32>
    %cst_7 = arith.constant 0.000000e+00 : f32
    %14 = vector.broadcast %cst_7 : f32 to vector<8x1xf32>
    %15 = arith.maximumf %13, %14 : vector<8x1xf32>
    %16 = vector.shape_cast %15 : vector<8x1xf32> to vector<8x1xf32>
    %17 = vector.broadcast %16 : vector<8x1xf32> to vector<8x128xf32>
    %c0_8 = arith.constant 0 : index
    %c0_9 = arith.constant 0 : index
    %18 = vector.load %arg4[%c0_8, %c0_9] : memref<8x128xf32, #tpu.memory_space<vmem>>, vector<8x128xf32>
    tpu.vector_store %arg4[%c0_8, %c0_9], %17 {strides = array<i32>} : memref<8x128xf32, #tpu.memory_space<vmem>>, vector<8x128xf32>,
    return
  }
  func.func @transform_0(%arg0: i32) -> (i32, i32) {
    %c0_i32 = arith.constant 0 : i32
    %c0_i32_0 = arith.constant 0 : i32
    return %arg0, %c0_i32 : i32, i32
  }
  func.func @transform_1(%arg0: i32) -> (i32, i32) {
    %c0_i32 = arith.constant 0 : i32
    %c0_i32_0 = arith.constant 0 : i32
    return %arg0, %c0_i32 : i32, i32
  }
  func.func @transform_2(%arg0: i32) -> (i32, i32) {
    %c0_i32 = arith.constant 0 : i32
    %c0_i32_0 = arith.constant 0 : i32
    return %arg0, %c0_i32 : i32, i32
  }
  func.func @transform_3(%arg0: i32) -> (i32, i32) {
    %c0_i32 = arith.constant 0 : i32
    %c0_i32_0 = arith.constant 0 : i32
    return %arg0, %c0_i32 : i32, i32
  }
}

</mosaic_0001>

<llo_original>
// kernel: tpu_custom_call.1
$region0: #{tpu_custom_call.1}
  #allocation0 [shape = 'u32[]', space=smem, size = 0x4, offset = 0x4, fixed_abs, tag = 'smem constant byte address 0x4 - core index']
  #allocation1 [shape = 'u32[72,128]{1,0:T(1,128)}', space=vmem, size = 0x9000, scoped, tag = 'internal scratch']
  %s0 = inlined_call_operand.hbm [shape: f32[8,256], index: 0, kind: input, shape index: {}]
  %s1 = inlined_call_operand.hbm [shape: f32[8,256], index: 1, kind: input, shape index: {}]
  %s2 = inlined_call_operand.hbm [shape: f32[8,256], index: 2, kind: input, shape index: {}]
  %s3 = inlined_call_operand.hbm [shape: f32[8,128], index: 3, kind: output, shape index: {}]
  %s4 = sld [smem:[#allocation0]]
  $region34: #{tpu_custom_call.1} parent=0
    _
  %s6 = ssub.s32 1, %s4
  %s7 = scalar_select 0, %s6, %s4
  $region1: #{tpu_custom_call.1} parent=0
    #allocation2 [shape = 'u8[8192]{0}', space=vmem, size = 0x2000, scoped, tag = 'input window, operand 0, single buffered']
    #allocation3 [shape = 's32[1]{0}', space=sflag, size = 0x4, scoped, tag = 'scoped memory for tpu_custom_call.1']
    #allocation4 [shape = 's32[1]{0}', space=sflag, size = 0x4, scoped, tag = 'scoped memory for tpu_custom_call.1']
    #allocation5 [shape = 'u8[8192]{0}', space=vmem, size = 0x2000, scoped, tag = 'input window, operand 1, single buffered']
    #allocation6 [shape = 's32[1]{0}', space=sflag, size = 0x4, scoped, tag = 'scoped memory for tpu_custom_call.1']
    #allocation7 [shape = 'u8[8192]{0}', space=vmem, size = 0x2000, scoped, tag = 'input window, operand 2, single buffered']
    #allocation8 [shape = 'u8[4096]{0}', space=vmem, size = 0x1000, scoped, tag = 'output window, operand 0, single buffered']
    %8 = vsyncpa [#allocation3], 0
    %9 = vsyncpa [#allocation6], 0
    %10 = vsyncpa [#allocation4], 0
    // Predicated region
    $region2: #{tpu_custom_call.1} parent=1 // pred_check
      _
    $region3: #{tpu_custom_call.1} parent=1 // pred_check_branch
      %12 = sbr.rel (0) target = $region5
    $region4: #{tpu_custom_call.1} parent=1 // pred_region
      %14 = vsyncadd [#allocation3], 0
      %s16 = sshll.u32 %s0, 4
      %s17 = int_to_ptr.hbm [resolvable:$true] %s16
      %s18 = sshll.u32 [#allocation2], 4
      %s19 = int_to_ptr.vmem [resolvable:$true] %s18
      %21 = dma.hbm_to_vmem [thread:$0]  %s17, 256, %s19, [#allocation3]
    $region5: #{tpu_custom_call.1} parent=1 // pred_fallthru
      _
    // Predicated region
    $region6: #{tpu_custom_call.1} parent=1 // pred_check
      _
    $region7: #{tpu_custom_call.1} parent=1 // pred_check_branch
      %23 = sbr.rel (0) target = $region9
    $region8: #{tpu_custom_call.1} parent=1 // pred_region
      %25 = vsyncadd [#allocation6], 0
      %s27 = sshll.u32 %s1, 4
      %s28 = int_to_ptr.hbm [resolvable:$true] %s27
      %s29 = sshll.u32 [#allocation5], 4
      %s30 = int_to_ptr.vmem [resolvable:$true] %s29
      %32 = dma.hbm_to_vmem [thread:$0]  %s28, 256, %s30, [#allocation6]
    $region9: #{tpu_custom_call.1} parent=1 // pred_fallthru
      _
    // Predicated region
    $region10: #{tpu_custom_call.1} parent=1 // pred_check
      _
    $region11: #{tpu_custom_call.1} parent=1 // pred_check_branch
      %34 = sbr.rel (0) target = $region13
    $region12: #{tpu_custom_call.1} parent=1 // pred_region
      %36 = vsyncadd [#allocation6], 0
      %s38 = sshll.u32 %s2, 4
      %s39 = int_to_ptr.hbm [resolvable:$true] %s38
      %s40 = sshll.u32 [#allocation7], 4
      %s41 = int_to_ptr.vmem [resolvable:$true] %s40
      %43 = dma.hbm_to_vmem [thread:$0]  %s39, 256, %s41, [#allocation6]
    $region13: #{tpu_custom_call.1} parent=1 // pred_fallthru
      _
    // Predicated region
    $region14: #{tpu_custom_call.1} parent=1 // pred_check
      _
    $region15: #{tpu_custom_call.1} parent=1 // pred_check_branch
      %45 = sbr.rel (0) target = $region17
    $region16: #{tpu_custom_call.1} parent=1 // pred_region
      %47 = dma.done [#allocation3], 256
    $region17: #{tpu_custom_call.1} parent=1 // pred_fallthru
      _
    // Predicated region
    $region18: #{tpu_custom_call.1} parent=1 // pred_check
      _
    $region19: #{tpu_custom_call.1} parent=1 // pred_check_branch
      %49 = sbr.rel (0) target = $region21
    $region20: #{tpu_custom_call.1} parent=1 // pred_region
      %51 = dma.done [#allocation6], 256
    $region21: #{tpu_custom_call.1} parent=1 // pred_fallthru
      _
    // Predicated region
    $region22: #{tpu_custom_call.1} parent=1 // pred_check
      _
    $region23: #{tpu_custom_call.1} parent=1 // pred_check_branch
      %53 = sbr.rel (0) target = $region25
    $region24: #{tpu_custom_call.1} parent=1 // pred_region
      %55 = dma.done [#allocation6], 256
    $region25: #{tpu_custom_call.1} parent=1 // pred_fallthru
      _
    %v56 = vld [vmem:[#allocation2] sm:$0xff]
    %v57 = vld [vmem:[#allocation2 + $0x8] sm:$0xff]
    %v58 = vld [vmem:[#allocation5] sm:$0xff]
    %v59 = vld [vmem:[#allocation5 + $0x8] sm:$0xff]
    %v60 = vsub.f32 %v56, %v58
    %v61 = vsub.f32 %v57, %v59
    %v62 = vld [vmem:[#allocation7] sm:$0xff]
    %v63 = vld [vmem:[#allocation7 + $0x8] sm:$0xff]
    %v64 = vsub.f32 %v56, %v62
    %v65 = vsub.f32 %v57, %v63
    %v66 = vmul.f32 %v60, %v60
    %v67 = vmul.f32 %v61, %v61
    %v68 = vadd.f32 %v66, %v67
    %69 = vadd.xlane.f32.xlu0 %v68
    %v70 = vpop.xlane.xlu0 %69
    %v71 = vmul.f32 %v64, %v64
    %v72 = vmul.f32 %v65, %v65
    %v73 = vadd.f32 %v71, %v72
    %74 = vadd.xlane.f32.xlu0 %v73
    %v75 = vpop.xlane.xlu0 %74
    %v76 = vsub.f32 %v70, %v75
    %v77 = vadd.f32 %v76, 0.2
    %v78 = vmax.f32 %v77, 0.0
    %79 = vst [vmem:[#allocation8] sm:$0xff] %v78
    // Predicated region
    $region26: #{tpu_custom_call.1} parent=1 // pred_check
      _
    $region27: #{tpu_custom_call.1} parent=1 // pred_check_branch
      %81 = sbr.rel (0) target = $region29
    $region28: #{tpu_custom_call.1} parent=1 // pred_region
      %83 = vsyncadd [#allocation4], 0
      %s85 = sshll.u32 [#allocation8], 4
      %s86 = int_to_ptr.vmem [resolvable:$true] %s85
      %s87 = sshll.u32 %s3, 4
      %s88 = int_to_ptr.hbm [resolvable:$true] %s87
      %90 = dma.vmem_to_hbm [thread:$0]  %s86, 128, %s88, [#allocation4]
    $region29: #{tpu_custom_call.1} parent=1 // pred_fallthru
      _
    // Predicated region
    $region30: #{tpu_custom_call.1} parent=1 // pred_check
      _
    $region31: #{tpu_custom_call.1} parent=1 // pred_check_branch
      %92 = sbr.rel (0) target = $region33
    $region32: #{tpu_custom_call.1} parent=1 // pred_region
      %94 = dma.done [#allocation4], 128
    $region33: #{tpu_custom_call.1} parent=1 // pred_fallthru
      _
    %95 = vsyncpa [#allocation3], 1
    %96 = vsyncpa [#allocation6], 1
    %97 = vsyncpa [#allocation4], 1

</llo_original>
